<compile_context>
chip_gen: v7x
topology: tpu7x:2x2x1
jax: 0.10.0
libtpu: 0.0.40
codegen_flags: <defaults>
</compile_context>

<pallas_src>
import jax
import jax.numpy as jnp
from jax.experimental import pallas as pl
from jax.experimental.pallas import tpu as pltpu

# Layer dims: 1200 -> 256 -> 128 -> 64 -> 32 -> 4
DIMS = [1200, 256, 128, 64, 32, 4]

# Row offsets of w2..w5 inside the packed (480, 128) buffer.
# All offsets are multiples of 16 (bf16 sublane tile), so slices stay aligned.
_W2_R0, _W2_R1 = 0, 256      # w2: (256, 128)
_W3_R0, _W3_R1 = 256, 384    # w3: (128,  64)
_W4_R0, _W4_R1 = 384, 448    # w4: ( 64,  32)
_W5_R0, _W5_R1 = 448, 480    # w5: ( 32,   4)


def _mlp_kernel(x_ref, w1_ref, wrest_ref, bias_ref, o_ref):
    """Fused 5-layer MLP + ReLU + log_softmax; everything resident in VMEM."""
    # bf16 activations into the MXU, f32 accumulation out of it.
    x = x_ref[...].astype(jnp.bfloat16)

    b1 = bias_ref[0:1, 0:256]
    b2 = bias_ref[1:2, 0:128]
    b3 = bias_ref[2:3, 0:64]
    b4 = bias_ref[3:4, 0:32]
    b5 = bias_ref[4:5, 0:4]

    # fc1 + relu   (dropout == identity at inference)
    h = jnp.dot(x, w1_ref[...], preferred_element_type=jnp.float32) + b1
    h = jnp.maximum(h, 0.0).astype(jnp.bfloat16)

    # fc2 + relu
    w2 = wrest_ref[_W2_R0:_W2_R1, :]
    h = jnp.dot(h, w2, preferred_element_type=jnp.float32) + b2
    h = jnp.maximum(h, 0.0).astype(jnp.bfloat16)

    # fc3 + relu
    w3 = wrest_ref[_W3_R0:_W3_R1, 0:64]
    h = jnp.dot(h, w3, preferred_element_type=jnp.float32) + b3
    h = jnp.maximum(h, 0.0).astype(jnp.bfloat16)

    # fc4 + relu
    w4 = wrest_ref[_W4_R0:_W4_R1, 0:32]
    h = jnp.dot(h, w4, preferred_element_type=jnp.float32) + b4
    h = jnp.maximum(h, 0.0).astype(jnp.bfloat16)

    # fc5
    w5 = wrest_ref[_W5_R0:_W5_R1, 0:4]
    logits = jnp.dot(h, w5, preferred_element_type=jnp.float32) + b5

    # log_softmax along dim=1 (feature axis), numerically stable (f32).
    m = jnp.max(logits, axis=1, keepdims=True)
    shifted = logits - m
    lse = jnp.log(jnp.sum(jnp.exp(shifted), axis=1, keepdims=True))
    o_ref[...] = (shifted - lse).astype(o_ref.dtype)


def pack_params(params):
    """One-time packing of the 10 Linear params into 3 DMA-friendly buffers.

    Returns (w1_bf16, wrest_bf16, biases_f32):
      * w1_bf16:  (1200, 256) bf16
      * wrest:    (480, 128) bf16  -- w2..w5 row-stacked, zero lane padding
      * biases:   (8, 256) f32     -- bias i in row i, zero padded
    """
    (w1, b1), (w2, b2), (w3, b3), (w4, b4), (w5, b5) = params

    w1_bf16 = w1.astype(jnp.bfloat16)

    wrest = jnp.concatenate(
        [
            w2,                                   # (256, 128)
            jnp.pad(w3, ((0, 0), (0, 128 - 64))),   # (128, 128)
            jnp.pad(w4, ((0, 0), (0, 128 - 32))),   # ( 64, 128)
            jnp.pad(w5, ((0, 0), (0, 128 - 4))),    # ( 32, 128)
        ],
        axis=0,
    ).astype(jnp.bfloat16)                        # (480, 128)

    biases = jnp.zeros((8, 256), jnp.float32)
    biases = biases.at[0, :256].set(b1.reshape(-1))
    biases = biases.at[1, :128].set(b2.reshape(-1))
    biases = biases.at[2, :64].set(b3.reshape(-1))
    biases = biases.at[3, :32].set(b4.reshape(-1))
    biases = biases.at[4, :4].set(b5.reshape(-1))

    return w1_bf16, wrest, biases


def classifier_forward(x, packed_params):
    """x: (B, C, H, W) float32 with C*H*W == 1200. Returns (B, 4) log-probs."""
    B = x.shape[0]
    x_flat = x.reshape(B, -1)  # matches torch's x.view(x.shape[0], -1)
    assert x_flat.shape[1] == DIMS[0], (
        f"expected {DIMS[0]} features, got {x_flat.shape[1]}")

    w1_bf16, wrest, biases = packed_params

    out = pl.pallas_call(
        _mlp_kernel,
        out_shape=jax.ShapeDtypeStruct((B, DIMS[-1]), jnp.float32),
        # No grid: the whole problem fits in VMEM; each operand is a single
        # full block DMA'd HBM->VMEM by Pallas (4 input DMAs total).
        in_specs=[pl.BlockSpec(memory_space=pltpu.VMEM)] * 4,
        out_specs=pl.BlockSpec(memory_space=pltpu.VMEM),
    )(x_flat, w1_bf16, wrest, biases)
    return out


def init_params(key):
    """Deterministic init mirroring nn.Linear shapes (stored as (in, out))."""
    params = []
    for i in range(5):
        fan_in, fan_out = DIMS[i], DIMS[i + 1]
        key, kw, kb = jax.random.split(key, 3)
        bound = 1.0 / jnp.sqrt(fan_in)
        w = jax.random.uniform(kw, (fan_in, fan_out), jnp.float32, -bound, bound)
        b = jax.random.uniform(kb, (1, fan_out), jnp.float32, -bound, bound)
        params.append((w, b))
    return params


def _reference_forward(x, params):
    """Pure-JAX f32 reference of the PyTorch forward (eval mode)."""
    h = x.reshape(x.shape[0], -1)
    for i, (w, b) in enumerate(params):
        h = h @ w + b
        if i < 4:
            h = jnp.maximum(h, 0.0)
    return jax.nn.log_softmax(h, axis=1)


if __name__ == "__main__":
    key = jax.random.PRNGKey(0)
    key, kx = jax.random.split(key)

    # Small NCHW input whose flattened feature count is 1200: (2, 3, 20, 20).
    x = jax.random.normal(kx, (2, 3, 20, 20), dtype=jnp.float32)

    params = init_params(key)
    packed = pack_params(params)   # one-time packing / bf16 cast

    out = classifier_forward(x, packed)
    out = jax.block_until_ready(out)

    assert out.shape == (2, 4)

    # Sanity 1: log_softmax rows must (approximately) exp-sum to 1.
    row_sums = jnp.sum(jnp.exp(out), axis=1)
    assert bool(jnp.all(jnp.abs(row_sums - 1.0) < 1e-4))

    # Sanity 2: bf16-weight kernel matches the f32 reference (loose tol).
    ref = _reference_forward(x, params)
    assert bool(jnp.max(jnp.abs(out - ref)) < 0.1)

    print("KERNEL_OK")
</pallas_src>

<mosaic_0001>
module attributes {stable_mosaic.version = 11 : i64} {
  func.func @_mlp_kernel(%arg0: memref<2x1200xf32, #tpu.memory_space<vmem>>, %arg1: memref<1200x256xbf16, #tpu.memory_space<vmem>>, %arg2: memref<480x128xbf16, #tpu.memory_space<vmem>>, %arg3: memref<8x256xf32, #tpu.memory_space<vmem>>, %arg4: memref<2x4xf32, #tpu.memory_space<vmem>>) attributes {dimension_semantics = [], scalar_prefetch = 0 : i64, scratch_operands = 0 : i64, tpu.core_type = #tpu.core_type<tc>} {
    %c0 = arith.constant 0 : index
    %c0_0 = arith.constant 0 : index
    %0 = vector.load %arg0[%c0, %c0_0] : memref<2x1200xf32, #tpu.memory_space<vmem>>, vector<2x1200xf32>
    %1 = arith.truncf %0 : vector<2x1200xf32> to vector<2x1200xbf16>
    %c0_1 = arith.constant 0 : index
    %c0_2 = arith.constant 0 : index
    %2 = vector.load %arg3[%c0_1, %c0_2] : memref<8x256xf32, #tpu.memory_space<vmem>>, vector<1x256xf32>
    %c1 = arith.constant 1 : index
    %c0_3 = arith.constant 0 : index
    %3 = vector.load %arg3[%c1, %c0_3] : memref<8x256xf32, #tpu.memory_space<vmem>>, vector<1x128xf32>
    %c2 = arith.constant 2 : index
    %c0_4 = arith.constant 0 : index
    %4 = vector.load %arg3[%c2, %c0_4] : memref<8x256xf32, #tpu.memory_space<vmem>>, vector<1x64xf32>
    %c3 = arith.constant 3 : index
    %c0_5 = arith.constant 0 : index
    %5 = vector.load %arg3[%c3, %c0_5] : memref<8x256xf32, #tpu.memory_space<vmem>>, vector<1x32xf32>
    %c4 = arith.constant 4 : index
    %c0_6 = arith.constant 0 : index
    %6 = vector.load %arg3[%c4, %c0_6] : memref<8x256xf32, #tpu.memory_space<vmem>>, vector<1x4xf32>
    %c0_7 = arith.constant 0 : index
    %c0_8 = arith.constant 0 : index
    %7 = vector.load %arg1[%c0_7, %c0_8] : memref<1200x256xbf16, #tpu.memory_space<vmem>>, vector<1200x256xbf16>
    %cst = arith.constant dense<0.000000e+00> : vector<2x256xf32>
    %8 = tpu.matmul %1, %7, %cst {dimension_numbers = #tpu.dot_dimension_numbers<[1], [0], [0], [1], [0, 0, 1, 1], [], []>} : vector<2x1200xbf16>, vector<1200x256xbf16>, vector<2x256xf32> -> vector<2x256xf32>
    %9 = vector.broadcast %2 : vector<1x256xf32> to vector<2x256xf32>
    %10 = arith.addf %8, %9 : vector<2x256xf32>
    %cst_9 = arith.constant 0.000000e+00 : f32
    %11 = vector.broadcast %cst_9 : f32 to vector<2x256xf32>
    %12 = arith.maximumf %10, %11 : vector<2x256xf32>
    %13 = arith.truncf %12 : vector<2x256xf32> to vector<2x256xbf16>
    %c0_10 = arith.constant 0 : index
    %c0_11 = arith.constant 0 : index
    %14 = vector.load %arg2[%c0_10, %c0_11] : memref<480x128xbf16, #tpu.memory_space<vmem>>, vector<256x128xbf16>
    %cst_12 = arith.constant dense<0.000000e+00> : vector<2x128xf32>
    %15 = tpu.matmul %13, %14, %cst_12 {dimension_numbers = #tpu.dot_dimension_numbers<[1], [0], [0], [1], [0, 0, 1, 1], [], []>} : vector<2x256xbf16>, vector<256x128xbf16>, vector<2x128xf32> -> vector<2x128xf32>
    %16 = vector.broadcast %3 : vector<1x128xf32> to vector<2x128xf32>
    %17 = arith.addf %15, %16 : vector<2x128xf32>
    %cst_13 = arith.constant 0.000000e+00 : f32
    %18 = vector.broadcast %cst_13 : f32 to vector<2x128xf32>
    %19 = arith.maximumf %17, %18 : vector<2x128xf32>
    %20 = arith.truncf %19 : vector<2x128xf32> to vector<2x128xbf16>
    %c256 = arith.constant 256 : index
    %c0_14 = arith.constant 0 : index
    %21 = vector.load %arg2[%c256, %c0_14] : memref<480x128xbf16, #tpu.memory_space<vmem>>, vector<128x64xbf16>
    %cst_15 = arith.constant dense<0.000000e+00> : vector<2x64xf32>
    %22 = tpu.matmul %20, %21, %cst_15 {dimension_numbers = #tpu.dot_dimension_numbers<[1], [0], [0], [1], [0, 0, 1, 1], [], []>} : vector<2x128xbf16>, vector<128x64xbf16>, vector<2x64xf32> -> vector<2x64xf32>
    %23 = vector.broadcast %4 : vector<1x64xf32> to vector<2x64xf32>
    %24 = arith.addf %22, %23 : vector<2x64xf32>
    %cst_16 = arith.constant 0.000000e+00 : f32
    %25 = vector.broadcast %cst_16 : f32 to vector<2x64xf32>
    %26 = arith.maximumf %24, %25 : vector<2x64xf32>
    %27 = arith.truncf %26 : vector<2x64xf32> to vector<2x64xbf16>
    %c384 = arith.constant 384 : index
    %c0_17 = arith.constant 0 : index
    %28 = vector.load %arg2[%c384, %c0_17] : memref<480x128xbf16, #tpu.memory_space<vmem>>, vector<64x32xbf16>
    %cst_18 = arith.constant dense<0.000000e+00> : vector<2x32xf32>
    %29 = tpu.matmul %27, %28, %cst_18 {dimension_numbers = #tpu.dot_dimension_numbers<[1], [0], [0], [1], [0, 0, 1, 1], [], []>} : vector<2x64xbf16>, vector<64x32xbf16>, vector<2x32xf32> -> vector<2x32xf32>
    %30 = vector.broadcast %5 : vector<1x32xf32> to vector<2x32xf32>
    %31 = arith.addf %29, %30 : vector<2x32xf32>
    %cst_19 = arith.constant 0.000000e+00 : f32
    %32 = vector.broadcast %cst_19 : f32 to vector<2x32xf32>
    %33 = arith.maximumf %31, %32 : vector<2x32xf32>
    %34 = arith.truncf %33 : vector<2x32xf32> to vector<2x32xbf16>
    %c448 = arith.constant 448 : index
    %c0_20 = arith.constant 0 : index
    %35 = vector.load %arg2[%c448, %c0_20] : memref<480x128xbf16, #tpu.memory_space<vmem>>, vector<32x4xbf16>
    %cst_21 = arith.constant dense<0.000000e+00> : vector<2x4xf32>
    %36 = tpu.matmul %34, %35, %cst_21 {dimension_numbers = #tpu.dot_dimension_numbers<[1], [0], [0], [1], [0, 0, 1, 1], [], []>} : vector<2x32xbf16>, vector<32x4xbf16>, vector<2x4xf32> -> vector<2x4xf32>
    %37 = vector.broadcast %6 : vector<1x4xf32> to vector<2x4xf32>
    %38 = arith.addf %36, %37 : vector<2x4xf32>
    %cst_22 = arith.constant dense<0xFF800000> : vector<2xf32>
    %39 = vector.multi_reduction <maximumf>, %38, %cst_22 [1] : vector<2x4xf32> to vector<2xf32>
    %40 = vector.shape_cast %39 : vector<2xf32> to vector<2x1xf32>
    %41 = vector.broadcast %40 : vector<2x1xf32> to vector<2x4xf32>
    %42 = arith.subf %38, %41 : vector<2x4xf32>
    %43 = math.exp %42 : vector<2x4xf32>
    %cst_23 = arith.constant dense<0.000000e+00> : vector<2xf32>
    %44 = vector.multi_reduction <add>, %43, %cst_23 [1] : vector<2x4xf32> to vector<2xf32>
    %45 = vector.shape_cast %44 : vector<2xf32> to vector<2x1xf32>
    %46 = math.log %45 : vector<2x1xf32>
    %47 = vector.broadcast %46 : vector<2x1xf32> to vector<2x4xf32>
    %48 = arith.subf %42, %47 : vector<2x4xf32>
    %c0_24 = arith.constant 0 : index
    %c0_25 = arith.constant 0 : index
    %49 = vector.load %arg4[%c0_24, %c0_25] : memref<2x4xf32, #tpu.memory_space<vmem>>, vector<2x4xf32>
    tpu.vector_store %arg4[%c0_24, %c0_25], %48 {strides = array<i32>} : memref<2x4xf32, #tpu.memory_space<vmem>>, vector<2x4xf32>,
    return
  }
}

</mosaic_0001>

<llo_original>
// kernel: tpu_custom_call.1
$region0: #{tpu_custom_call.1}
  #allocation0 [shape = 'u32[]', space=smem, size = 0x4, offset = 0x4, fixed_abs, tag = 'smem constant byte address 0x4 - core index']
  #allocation1 [shape = 'u32[144,128]{1,0:T(1,128)}', space=vmem, size = 0x12000, scoped, tag = 'internal scratch']
  %s0 = inlined_call_operand.hbm [shape: f32[2,1200], index: 0, kind: input, shape index: {}]
  %s1 = inlined_call_operand.hbm [shape: bf16[1200,256], index: 1, kind: input, shape index: {}]
  %s2 = inlined_call_operand.hbm [shape: bf16[480,128], index: 2, kind: input, shape index: {}]
  %s3 = inlined_call_operand.hbm [shape: f32[8,256], index: 3, kind: input, shape index: {}]
  %s4 = inlined_call_operand.hbm [shape: f32[2,4], index: 4, kind: output, shape index: {}]
  %s5 = sld [smem:[#allocation0]]
  $region42: #{tpu_custom_call.1} parent=0
    _
  %s7 = ssub.s32 1, %s5
  %s8 = scalar_select 0, %s7, %s5
  $region1: #{tpu_custom_call.1} parent=0
    #allocation2 [shape = 'u8[10240]{0}', space=vmem, size = 0x2800, scoped, tag = 'input window, operand 0, single buffered']
    #allocation3 [shape = 's32[1]{0}', space=sflag, size = 0x4, scoped, tag = 'scoped memory for tpu_custom_call.1']
    #allocation4 [shape = 's32[1]{0}', space=sflag, size = 0x4, scoped, tag = 'scoped memory for tpu_custom_call.1']
    #allocation5 [shape = 'u8[614400]{0}', space=vmem, size = 0x96000, scoped, tag = 'input window, operand 1, single buffered']
    #allocation6 [shape = 's32[1]{0}', space=sflag, size = 0x4, scoped, tag = 'scoped memory for tpu_custom_call.1']
    #allocation7 [shape = 'u8[122880]{0}', space=vmem, size = 0x1e000, scoped, tag = 'input window, operand 2, single buffered']
    #allocation8 [shape = 'u8[8192]{0}', space=vmem, size = 0x2000, scoped, tag = 'input window, operand 3, single buffered']
    #allocation9 [shape = 's32[1]{0}', space=sflag, size = 0x4, scoped, tag = 'scoped memory for tpu_custom_call.1']
    #allocation10 [shape = 'u8[1024]{0}', space=vmem, size = 0x400, scoped, tag = 'output window, operand 0, single buffered']
    %9 = vsyncpa [#allocation3], 0
    %10 = vsyncpa [#allocation6], 0
    %11 = vsyncpa [#allocation9], 0
    %12 = vsyncpa [#allocation4], 0
    // Predicated region
    $region2: #{tpu_custom_call.1} parent=1 // pred_check
      _
    $region3: #{tpu_custom_call.1} parent=1 // pred_check_branch
      %14 = sbr.rel (0) target = $region5
    $region4: #{tpu_custom_call.1} parent=1 // pred_region
      %s16 = ssub.s32 320, 320
      %17 = vsyncadd [#allocation3], %s16
      %s19 = sshll.u32 [#allocation2], 4
      %s20 = int_to_ptr.vmem [resolvable:$true] %s19
      %22 = dma.hbm_to_vmem [thread:$0]  %s0, 320, %s20, [#allocation3]
    $region5: #{tpu_custom_call.1} parent=1 // pred_fallthru
      _
    // Predicated region
    $region6: #{tpu_custom_call.1} parent=1 // pred_check
      _
    $region7: #{tpu_custom_call.1} parent=1 // pred_check_branch
      %24 = sbr.rel (0) target = $region9
    $region8: #{tpu_custom_call.1} parent=1 // pred_region
      %s26 = ssub.s32 19200, 19200
      %27 = vsyncadd [#allocation6], %s26
      %s28 = sshll.u32 [#allocation5], 4
      %s29 = int_to_ptr.vmem [resolvable:$true] %s28
      %34 = dma.hbm_to_vmem [thread:$0]  %s1, 19200, %s29, [#allocation6], 128, 128, 8
    $region9: #{tpu_custom_call.1} parent=1 // pred_fallthru
      _
    // Predicated region
    $region10: #{tpu_custom_call.1} parent=1 // pred_check
      _
    $region11: #{tpu_custom_call.1} parent=1 // pred_check_branch
      %36 = sbr.rel (0) target = $region13
    $region12: #{tpu_custom_call.1} parent=1 // pred_region
      %s38 = ssub.s32 3840, 3840
      %39 = vsyncadd [#allocation6], %s38
      %s40 = sshll.u32 [#allocation7], 4
      %s41 = int_to_ptr.vmem [resolvable:$true] %s40
      %46 = dma.hbm_to_vmem [thread:$0]  %s2, 3840, %s41, [#allocation6], 64, 64, 4
    $region13: #{tpu_custom_call.1} parent=1 // pred_fallthru
      _
    // Predicated region
    $region14: #{tpu_custom_call.1} parent=1 // pred_check
      _
    $region15: #{tpu_custom_call.1} parent=1 // pred_check_branch
      %48 = sbr.rel (0) target = $region17
    $region16: #{tpu_custom_call.1} parent=1 // pred_region
      %s50 = ssub.s32 256, 256
      %51 = vsyncadd [#allocation9], %s50
      %s53 = sshll.u32 [#allocation8], 4
      %s54 = int_to_ptr.vmem [resolvable:$true] %s53
      %56 = dma.hbm_to_vmem [thread:$0]  %s3, 256, %s54, [#allocation9]
    $region17: #{tpu_custom_call.1} parent=1 // pred_fallthru
      _
    // Predicated region
    $region18: #{tpu_custom_call.1} parent=1 // pred_check
      _
    $region19: #{tpu_custom_call.1} parent=1 // pred_check_branch
      %58 = sbr.rel (0) target = $region21
    $region20: #{tpu_custom_call.1} parent=1 // pred_region
      %59 = dma.done [#allocation3], 320
    $region21: #{tpu_custom_call.1} parent=1 // pred_fallthru
      _
    // Predicated region
    $region22: #{tpu_custom_call.1} parent=1 // pred_check
      _
    $region23: #{tpu_custom_call.1} parent=1 // pred_check_branch
      %61 = sbr.rel (0) target = $region25
    $region24: #{tpu_custom_call.1} parent=1 // pred_region
      %62 = dma.done [#allocation6], 19200
    $region25: #{tpu_custom_call.1} parent=1 // pred_fallthru
      _
    // Predicated region
    $region26: #{tpu_custom_call.1} parent=1 // pred_check
      _
    $region27: #{tpu_custom_call.1} parent=1 // pred_check_branch
      %64 = sbr.rel (0) target = $region29
    $region28: #{tpu_custom_call.1} parent=1 // pred_region
      %65 = dma.done [#allocation6], 3840
    $region29: #{tpu_custom_call.1} parent=1 // pred_fallthru
      _
    // Predicated region
    $region30: #{tpu_custom_call.1} parent=1 // pred_check
      _
    $region31: #{tpu_custom_call.1} parent=1 // pred_check_branch
      %67 = sbr.rel (0) target = $region33
    $region32: #{tpu_custom_call.1} parent=1 // pred_region
      %68 = dma.done [#allocation9], 256
    $region33: #{tpu_custom_call.1} parent=1 // pred_fallthru
      _
    %v70 = vld [vmem:[#allocation2] sm:$0xff]
    %v71 = vld [vmem:[#allocation2 + $0x8] sm:$0xff]
    %v72 = vld [vmem:[#allocation2 + $0x10] sm:$0xf]
    %v76 = vcombine.high %v70, %v70
    %v78 = vunpack.c.l.s4 1983009808
    %v79 = vunpack.c.0.s8 %v78
    %v80 = vlaneseq
    %v81 = vshrl.u32 %v80, 7
    %v82 = vsub.s32 %v79, %v81
    %v83 = vrot.slane %v70, %v82
    %v85 = vunpack.c.l.s4 1983009808
    %v86 = vunpack.c.0.s8 %v85
    %v87 = vlaneseq
    %v88 = vshrl.u32 %v87, 7
    %v89 = vsub.s32 %v86, %v88
    %v90 = vrot.slane %v76, %v89
    %v91 = vcombine.high %v83, %v83
    %v92 = vcombine.high %v90, %v90
    %v93 = vcombine.high %v71, %v71
    %v95 = vunpack.c.l.s4 1983009808
    %v96 = vunpack.c.0.s8 %v95
    %v97 = vlaneseq
    %v98 = vshrl.u32 %v97, 7
    %v99 = vsub.s32 %v96, %v98
    %v100 = vrot.slane %v71, %v99
    %v102 = vunpack.c.l.s4 1983009808
    %v103 = vunpack.c.0.s8 %v102
    %v104 = vlaneseq
    %v105 = vshrl.u32 %v104, 7
    %v106 = vsub.s32 %v103, %v105
    %v107 = vrot.slane %v93, %v106
    %v108 = vcombine.high %v100, %v100
    %v109 = vcombine.high %v107, %v107
    %v111 = vunpack.c.l.s4 1983009808
    %v112 = vunpack.c.0.s8 %v111
    %v113 = vlaneseq
    %v114 = vshrl.u32 %v113, 7
    %v115 = vsub.s32 %v112, %v114
    %v116 = vrot.slane %v72, %v115
    %v117 = vcombine.high %v116, %v116
    %v128 = vpack.c.bf16 %v83, %v83
    %v129 = vpack.c.bf16 %v91, %v91
    %v130 = vpack.c.bf16 %v90, %v90
    %v131 = vpack.c.bf16 %v92, %v92
    %v132 = vpack.c.bf16 %v100, %v100
    %v133 = vpack.c.bf16 %v108, %v108
    %v134 = vpack.c.bf16 %v107, %v107
    %v135 = vpack.c.bf16 %v109, %v109
    %v136 = vpack.c.bf16 %v116, %v116
    %v137 = vpack.c.bf16 %v117, %v117
    %v138 = vld [vmem:[#allocation8] ss:$8 sm:$0x3]
    %v139 = vld [vmem:[#allocation8 + $0x1] ss:$0 sm:$0xff]
    %v140 = vld [vmem:[#allocation8 + $0x2] ss:$0 sm:$0xff]
    %v141 = vld [vmem:[#allocation8 + $0x3] ss:$0 sm:$0xff]
    %v142 = vld [vmem:[#allocation8 + $0x4] ss:$0 sm:$0xff]
    %v143 = vld [vmem:[#allocation5] sm:$0xff]
    %v144 = vld [vmem:[#allocation5 + $0x8] sm:$0xff]
    %v145 = vld [vmem:[#allocation5 + $0x10] sm:$0xff]
    %v146 = vld [vmem:[#allocation5 + $0x18] sm:$0xff]
    %v147 = vld [vmem:[#allocation5 + $0x20] sm:$0xff]
    %v148 = vld [vmem:[#allocation5 + $0x28] sm:$0xff]
    %v149 = vld [vmem:[#allocation5 + $0x30] sm:$0xff]
    %v150 = vld [vmem:[#allocation5 + $0x38] sm:$0xff]
    %v151 = vld [vmem:[#allocation5 + $0x40] sm:$0xff]
    %v152 = vld [vmem:[#allocation5 + $0x48] sm:$0xff]
    %v153 = vld [vmem:[#allocation5 + $0x50] sm:$0xff]
    %v154 = vld [vmem:[#allocation5 + $0x58] sm:$0xff]
    %v155 = vld [vmem:[#allocation5 + $0x60] sm:$0xff]
    %v156 = vld [vmem:[#allocation5 + $0x68] sm:$0xff]
    %v157 = vld [vmem:[#allocation5 + $0x70] sm:$0xff]
    %v158 = vld [vmem:[#allocation5 + $0x78] sm:$0xff]
    %v159 = vld [vmem:[#allocation5 + $0x80] sm:$0xff]
    %v160 = vld [vmem:[#allocation5 + $0x88] sm:$0xff]
    %v161 = vld [vmem:[#allocation5 + $0x90] sm:$0xff]
    %v162 = vld [vmem:[#allocation5 + $0x98] sm:$0xff]
    %v163 = vld [vmem:[#allocation5 + $0xa0] sm:$0xff]
    %v164 = vld [vmem:[#allocation5 + $0xa8] sm:$0xff]
    %v165 = vld [vmem:[#allocation5 + $0xb0] sm:$0xff]
    %v166 = vld [vmem:[#allocation5 + $0xb8] sm:$0xff]
    %v167 = vld [vmem:[#allocation5 + $0xc0] sm:$0xff]
    %v168 = vld [vmem:[#allocation5 + $0xc8] sm:$0xff]
    %v169 = vld [vmem:[#allocation5 + $0xd0] sm:$0xff]
    %v170 = vld [vmem:[#allocation5 + $0xd8] sm:$0xff]
    %v171 = vld [vmem:[#allocation5 + $0xe0] sm:$0xff]
    %v172 = vld [vmem:[#allocation5 + $0xe8] sm:$0xff]
    %v173 = vld [vmem:[#allocation5 + $0xf0] sm:$0xff]
    %v174 = vld [vmem:[#allocation5 + $0xf8] sm:$0xff]
    %v175 = vld [vmem:[#allocation5 + $0x100] sm:$0xff]
    %v176 = vld [vmem:[#allocation5 + $0x108] sm:$0xff]
    %v177 = vld [vmem:[#allocation5 + $0x110] sm:$0xff]
    %v178 = vld [vmem:[#allocation5 + $0x118] sm:$0xff]
    %v179 = vld [vmem:[#allocation5 + $0x120] sm:$0xff]
    %v180 = vld [vmem:[#allocation5 + $0x128] sm:$0xff]
    %v181 = vld [vmem:[#allocation5 + $0x130] sm:$0xff]
    %v182 = vld [vmem:[#allocation5 + $0x138] sm:$0xff]
    %v183 = vld [vmem:[#allocation5 + $0x140] sm:$0xff]
    %v184 = vld [vmem:[#allocation5 + $0x148] sm:$0xff]
    %v185 = vld [vmem:[#allocation5 + $0x150] sm:$0xff]
    %v186 = vld [vmem:[#allocation5 + $0x158] sm:$0xff]
    %v187 = vld [vmem:[#allocation5 + $0x160] sm:$0xff]
    %v188 = vld [vmem:[#allocation5 + $0x168] sm:$0xff]
    %v189 = vld [vmem:[#allocation5 + $0x170] sm:$0xff]
    %v190 = vld [vmem:[#allocation5 + $0x178] sm:$0xff]
    %v191 = vld [vmem:[#allocation5 + $0x180] sm:$0xff]
    %v192 = vld [vmem:[#allocation5 + $0x188] sm:$0xff]
    %v193 = vld [vmem:[#allocation5 + $0x190] sm:$0xff]
    %v194 = vld [vmem:[#allocation5 + $0x198] sm:$0xff]
    %v195 = vld [vmem:[#allocation5 + $0x1a0] sm:$0xff]
    %v196 = vld [vmem:[#allocation5 + $0x1a8] sm:$0xff]
    %v197 = vld [vmem:[#allocation5 + $0x1b0] sm:$0xff]
    %v198 = vld [vmem:[#allocation5 + $0x1b8] sm:$0xff]
    %v199 = vld [vmem:[#allocation5 + $0x1c0] sm:$0xff]
    %v200 = vld [vmem:[#allocation5 + $0x1c8] sm:$0xff]
    %v201 = vld [vmem:[#allocation5 + $0x1d0] sm:$0xff]
    %v202 = vld [vmem:[#allocation5 + $0x1d8] sm:$0xff]
    %v203 = vld [vmem:[#allocation5 + $0x1e0] sm:$0xff]
    %v204 = vld [vmem:[#allocation5 + $0x1e8] sm:$0xff]
    %v205 = vld [vmem:[#allocation5 + $0x1f0] sm:$0xff]
    %v206 = vld [vmem:[#allocation5 + $0x1f8] sm:$0xff]
    %v207 = vld [vmem:[#allocation5 + $0x200] sm:$0xff]
    %v208 = vld [vmem:[#allocation5 + $0x208] sm:$0xff]
    %v209 = vld [vmem:[#allocation5 + $0x210] sm:$0xff]
    %v210 = vld [vmem:[#allocation5 + $0x218] sm:$0xff]
    %v211 = vld [vmem:[#allocation5 + $0x220] sm:$0xff]
    %v212 = vld [vmem:[#allocation5 + $0x228] sm:$0xff]
    %v213 = vld [vmem:[#allocation5 + $0x230] sm:$0xff]
    %v214 = vld [vmem:[#allocation5 + $0x238] sm:$0xff]
    %v215 = vld [vmem:[#allocation5 + $0x240] sm:$0xff]
    %v216 = vld [vmem:[#allocation5 + $0x248] sm:$0xff]
    %v217 = vld [vmem:[#allocation5 + $0x250] sm:$0xff]
    %v218 = vld [vmem:[#allocation5 + $0x258] sm:$0xff]
    %v219 = vld [vmem:[#allocation5 + $0x260] sm:$0xff]
    %v220 = vld [vmem:[#allocation5 + $0x268] sm:$0xff]
    %v221 = vld [vmem:[#allocation5 + $0x270] sm:$0xff]
    %v222 = vld [vmem:[#allocation5 + $0x278] sm:$0xff]
    %v223 = vld [vmem:[#allocation5 + $0x280] sm:$0xff]
    %v224 = vld [vmem:[#allocation5 + $0x288] sm:$0xff]
    %v225 = vld [vmem:[#allocation5 + $0x290] sm:$0xff]
    %v226 = vld [vmem:[#allocation5 + $0x298] sm:$0xff]
    %v227 = vld [vmem:[#allocation5 + $0x2a0] sm:$0xff]
    %v228 = vld [vmem:[#allocation5 + $0x2a8] sm:$0xff]
    %v229 = vld [vmem:[#allocation5 + $0x2b0] sm:$0xff]
    %v230 = vld [vmem:[#allocation5 + $0x2b8] sm:$0xff]
    %v231 = vld [vmem:[#allocation5 + $0x2c0] sm:$0xff]
    %v232 = vld [vmem:[#allocation5 + $0x2c8] sm:$0xff]
    %v233 = vld [vmem:[#allocation5 + $0x2d0] sm:$0xff]
    %v234 = vld [vmem:[#allocation5 + $0x2d8] sm:$0xff]
    %v235 = vld [vmem:[#allocation5 + $0x2e0] sm:$0xff]
    %v236 = vld [vmem:[#allocation5 + $0x2e8] sm:$0xff]
    %v237 = vld [vmem:[#allocation5 + $0x2f0] sm:$0xff]
    %v238 = vld [vmem:[#allocation5 + $0x2f8] sm:$0xff]
    %v239 = vld [vmem:[#allocation5 + $0x300] sm:$0xff]
    %v240 = vld [vmem:[#allocation5 + $0x308] sm:$0xff]
    %v241 = vld [vmem:[#allocation5 + $0x310] sm:$0xff]
    %v242 = vld [vmem:[#allocation5 + $0x318] sm:$0xff]
    %v243 = vld [vmem:[#allocation5 + $0x320] sm:$0xff]
    %v244 = vld [vmem:[#allocation5 + $0x328] sm:$0xff]
    %v245 = vld [vmem:[#allocation5 + $0x330] sm:$0xff]
    %v246 = vld [vmem:[#allocation5 + $0x338] sm:$0xff]
    %v247 = vld [vmem:[#allocation5 + $0x340] sm:$0xff]
    %v248 = vld [vmem:[#allocation5 + $0x348] sm:$0xff]
    %v249 = vld [vmem:[#allocation5 + $0x350] sm:$0xff]
    %v250 = vld [vmem:[#allocation5 + $0x358] sm:$0xff]
    %v251 = vld [vmem:[#allocation5 + $0x360] sm:$0xff]
    %v252 = vld [vmem:[#allocation5 + $0x368] sm:$0xff]
    %v253 = vld [vmem:[#allocation5 + $0x370] sm:$0xff]
    %v254 = vld [vmem:[#allocation5 + $0x378] sm:$0xff]
    %v255 = vld [vmem:[#allocation5 + $0x380] sm:$0xff]
    %v256 = vld [vmem:[#allocation5 + $0x388] sm:$0xff]
    %v257 = vld [vmem:[#allocation5 + $0x390] sm:$0xff]
    %v258 = vld [vmem:[#allocation5 + $0x398] sm:$0xff]
    %v259 = vld [vmem:[#allocation5 + $0x3a0] sm:$0xff]
    %v260 = vld [vmem:[#allocation5 + $0x3a8] sm:$0xff]
    %v261 = vld [vmem:[#allocation5 + $0x3b0] sm:$0xff]
    %v262 = vld [vmem:[#allocation5 + $0x3b8] sm:$0xff]
    %v263 = vld [vmem:[#allocation5 + $0x3c0] sm:$0xff]
    %v264 = vld [vmem:[#allocation5 + $0x3c8] sm:$0xff]
    %v265 = vld [vmem:[#allocation5 + $0x3d0] sm:$0xff]
    %v266 = vld [vmem:[#allocation5 + $0x3d8] sm:$0xff]
    %v267 = vld [vmem:[#allocation5 + $0x3e0] sm:$0xff]
    %v268 = vld [vmem:[#allocation5 + $0x3e8] sm:$0xff]
    %v269 = vld [vmem:[#allocation5 + $0x3f0] sm:$0xff]
    %v270 = vld [vmem:[#allocation5 + $0x3f8] sm:$0xff]
    %v271 = vld [vmem:[#allocation5 + $0x400] sm:$0xff]
    %v272 = vld [vmem:[#allocation5 + $0x408] sm:$0xff]
    %v273 = vld [vmem:[#allocation5 + $0x410] sm:$0xff]
    %v274 = vld [vmem:[#allocation5 + $0x418] sm:$0xff]
    %v275 = vld [vmem:[#allocation5 + $0x420] sm:$0xff]
    %v276 = vld [vmem:[#allocation5 + $0x428] sm:$0xff]
    %v277 = vld [vmem:[#allocation5 + $0x430] sm:$0xff]
    %v278 = vld [vmem:[#allocation5 + $0x438] sm:$0xff]
    %v279 = vld [vmem:[#allocation5 + $0x440] sm:$0xff]
    %v280 = vld [vmem:[#allocation5 + $0x448] sm:$0xff]
    %v281 = vld [vmem:[#allocation5 + $0x450] sm:$0xff]
    %v282 = vld [vmem:[#allocation5 + $0x458] sm:$0xff]
    %v283 = vld [vmem:[#allocation5 + $0x460] sm:$0xff]
    %v284 = vld [vmem:[#allocation5 + $0x468] sm:$0xff]
    %v285 = vld [vmem:[#allocation5 + $0x470] sm:$0xff]
    %v286 = vld [vmem:[#allocation5 + $0x478] sm:$0xff]
    %v287 = vld [vmem:[#allocation5 + $0x480] sm:$0xff]
    %v288 = vld [vmem:[#allocation5 + $0x488] sm:$0xff]
    %v289 = vld [vmem:[#allocation5 + $0x490] sm:$0xff]
    %v290 = vld [vmem:[#allocation5 + $0x498] sm:$0xff]
    %v291 = vld [vmem:[#allocation5 + $0x4a0] sm:$0xff]
    %v292 = vld [vmem:[#allocation5 + $0x4a8] sm:$0xff]
    %v294 = vlaneseq
    %v295 = vshrl.u32 %v294, 7
    %v296 = vsub.s32 0, %v295
    %v297 = vrot.slane %v138, %v296
    %v298 = vlaneseq
    %v299 = vshrl.u32 %v298, 7
    %v300 = vsub.s32 1, %v299
    %v301 = vrot.slane %v138, %v300
    %v454 = vunpack.c.l.b16 %v143
    %v455 = vunpack.c.h.b16 %v143
    %v456 = vunpack.c.l.b16 %v144
    %v457 = vunpack.c.h.b16 %v144
    %v458 = vunpack.c.l.b16 %v145
    %v459 = vunpack.c.h.b16 %v145
    %v460 = vunpack.c.l.b16 %v146
    %v461 = vunpack.c.h.b16 %v146
    %v462 = vunpack.c.l.b16 %v147
    %v463 = vunpack.c.h.b16 %v147
    %v464 = vunpack.c.l.b16 %v148
    %v465 = vunpack.c.h.b16 %v148
    %v466 = vunpack.c.l.b16 %v149
    %v467 = vunpack.c.h.b16 %v149
    %v468 = vunpack.c.l.b16 %v150
    %v469 = vunpack.c.h.b16 %v150
    %v470 = vunpack.c.l.b16 %v151
    %v471 = vunpack.c.h.b16 %v151
    %v472 = vunpack.c.l.b16 %v152
    %v473 = vunpack.c.h.b16 %v152
    %v474 = vunpack.c.l.b16 %v153
    %v475 = vunpack.c.h.b16 %v153
    %v476 = vunpack.c.l.b16 %v154
    %v477 = vunpack.c.h.b16 %v154
    %v478 = vunpack.c.l.b16 %v155
    %v479 = vunpack.c.h.b16 %v155
    %v480 = vunpack.c.l.b16 %v156
    %v481 = vunpack.c.h.b16 %v156
    %v482 = vunpack.c.l.b16 %v157
    %v483 = vunpack.c.h.b16 %v157
    %v484 = vunpack.c.l.b16 %v158
    %v485 = vunpack.c.h.b16 %v158
    %v486 = vunpack.c.l.b16 %v159
    %v487 = vunpack.c.h.b16 %v159
    %v488 = vunpack.c.l.b16 %v160
    %v489 = vunpack.c.h.b16 %v160
    %v490 = vunpack.c.l.b16 %v161
    %v491 = vunpack.c.h.b16 %v161
    %v492 = vunpack.c.l.b16 %v162
    %v493 = vunpack.c.h.b16 %v162
    %v494 = vunpack.c.l.b16 %v163
    %v495 = vunpack.c.h.b16 %v163
    %v496 = vunpack.c.l.b16 %v164
    %v497 = vunpack.c.h.b16 %v164
    %v498 = vunpack.c.l.b16 %v165
    %v499 = vunpack.c.h.b16 %v165
    %v500 = vunpack.c.l.b16 %v166
    %v501 = vunpack.c.h.b16 %v166
    %v502 = vunpack.c.l.b16 %v167
    %v503 = vunpack.c.h.b16 %v167
    %v504 = vunpack.c.l.b16 %v168
    %v505 = vunpack.c.h.b16 %v168
    %v506 = vunpack.c.l.b16 %v169
    %v507 = vunpack.c.h.b16 %v169
    %v508 = vunpack.c.l.b16 %v170
    %v509 = vunpack.c.h.b16 %v170
    %v510 = vunpack.c.l.b16 %v171
    %v511 = vunpack.c.h.b16 %v171
    %v512 = vunpack.c.l.b16 %v172
    %v513 = vunpack.c.h.b16 %v172
    %v514 = vunpack.c.l.b16 %v173
    %v515 = vunpack.c.h.b16 %v173
    %v516 = vunpack.c.l.b16 %v174
    %v517 = vunpack.c.h.b16 %v174
    %v518 = vunpack.c.l.b16 %v175
    %v519 = vunpack.c.h.b16 %v175
    %v520 = vunpack.c.l.b16 %v176
    %v521 = vunpack.c.h.b16 %v176
    %v522 = vunpack.c.l.b16 %v177
    %v523 = vunpack.c.h.b16 %v177
    %v524 = vunpack.c.l.b16 %v178
    %v525 = vunpack.c.h.b16 %v178
    %v526 = vunpack.c.l.b16 %v179
    %v527 = vunpack.c.h.b16 %v179
    %v528 = vunpack.c.l.b16 %v180
    %v529 = vunpack.c.h.b16 %v180
    %v530 = vunpack.c.l.b16 %v181
    %v531 = vunpack.c.h.b16 %v181
    %v532 = vunpack.c.l.b16 %v182
    %v533 = vunpack.c.h.b16 %v182
    %v534 = vunpack.c.l.b16 %v183
    %v535 = vunpack.c.h.b16 %v183
    %v536 = vunpack.c.l.b16 %v184
    %v537 = vunpack.c.h.b16 %v184
    %v538 = vunpack.c.l.b16 %v185
    %v539 = vunpack.c.h.b16 %v185
    %v540 = vunpack.c.l.b16 %v186
    %v541 = vunpack.c.h.b16 %v186
    %v542 = vunpack.c.l.b16 %v187
    %v543 = vunpack.c.h.b16 %v187
    %v544 = vunpack.c.l.b16 %v188
    %v545 = vunpack.c.h.b16 %v188
    %v546 = vunpack.c.l.b16 %v189
    %v547 = vunpack.c.h.b16 %v189
    %v548 = vunpack.c.l.b16 %v190
    %v549 = vunpack.c.h.b16 %v190
    %v550 = vunpack.c.l.b16 %v191
    %v551 = vunpack.c.h.b16 %v191
    %v552 = vunpack.c.l.b16 %v192
    %v553 = vunpack.c.h.b16 %v192
    %v554 = vunpack.c.l.b16 %v193
    %v555 = vunpack.c.h.b16 %v193
    %v556 = vunpack.c.l.b16 %v194
    %v557 = vunpack.c.h.b16 %v194
    %v558 = vunpack.c.l.b16 %v195
    %v559 = vunpack.c.h.b16 %v195
    %v560 = vunpack.c.l.b16 %v196
    %v561 = vunpack.c.h.b16 %v196
    %v562 = vunpack.c.l.b16 %v197
    %v563 = vunpack.c.h.b16 %v197
    %v564 = vunpack.c.l.b16 %v198
    %v565 = vunpack.c.h.b16 %v198
    %v566 = vunpack.c.l.b16 %v199
    %v567 = vunpack.c.h.b16 %v199
    %v568 = vunpack.c.l.b16 %v200
    %v569 = vunpack.c.h.b16 %v200
    %v570 = vunpack.c.l.b16 %v201
    %v571 = vunpack.c.h.b16 %v201
    %v572 = vunpack.c.l.b16 %v202
    %v573 = vunpack.c.h.b16 %v202
    %v574 = vunpack.c.l.b16 %v203
    %v575 = vunpack.c.h.b16 %v203
    %v576 = vunpack.c.l.b16 %v204
    %v577 = vunpack.c.h.b16 %v204
    %v578 = vunpack.c.l.b16 %v205
    %v579 = vunpack.c.h.b16 %v205
    %v580 = vunpack.c.l.b16 %v206
    %v581 = vunpack.c.h.b16 %v206
    %v582 = vunpack.c.l.b16 %v207
    %v583 = vunpack.c.h.b16 %v207
    %v584 = vunpack.c.l.b16 %v208
    %v585 = vunpack.c.h.b16 %v208
    %v586 = vunpack.c.l.b16 %v209
    %v587 = vunpack.c.h.b16 %v209
    %v588 = vunpack.c.l.b16 %v210
    %v589 = vunpack.c.h.b16 %v210
    %v590 = vunpack.c.l.b16 %v211
    %v591 = vunpack.c.h.b16 %v211
    %v592 = vunpack.c.l.b16 %v212
    %v593 = vunpack.c.h.b16 %v212
    %v594 = vunpack.c.l.b16 %v213
    %v595 = vunpack.c.h.b16 %v213
    %v596 = vunpack.c.l.b16 %v214
    %v597 = vunpack.c.h.b16 %v214
    %v598 = vunpack.c.l.b16 %v215
    %v599 = vunpack.c.h.b16 %v215
    %v600 = vunpack.c.l.b16 %v216
    %v601 = vunpack.c.h.b16 %v216
    %v602 = vunpack.c.l.b16 %v217
    %v603 = vunpack.c.h.b16 %v217
    %v604 = vunpack.c.l.b16 %v218
    %v605 = vunpack.c.h.b16 %v218
    %v606 = vunpack.c.l.b16 %v219
    %v607 = vunpack.c.h.b16 %v219
    %v608 = vunpack.c.l.b16 %v220
    %v609 = vunpack.c.h.b16 %v220
    %v610 = vunpack.c.l.b16 %v221
    %v611 = vunpack.c.h.b16 %v221
    %v612 = vunpack.c.l.b16 %v222
    %v613 = vunpack.c.h.b16 %v222
    %v614 = vunpack.c.l.b16 %v223
    %v615 = vunpack.c.h.b16 %v223
    %v616 = vunpack.c.l.b16 %v224
    %v617 = vunpack.c.h.b16 %v224
    %v618 = vunpack.c.l.b16 %v225
    %v619 = vunpack.c.h.b16 %v225
    %v620 = vunpack.c.l.b16 %v226
    %v621 = vunpack.c.h.b16 %v226
    %v622 = vunpack.c.l.b16 %v227
    %v623 = vunpack.c.h.b16 %v227
    %v624 = vunpack.c.l.b16 %v228
    %v625 = vunpack.c.h.b16 %v228
    %v626 = vunpack.c.l.b16 %v229
    %v627 = vunpack.c.h.b16 %v229
    %v628 = vunpack.c.l.b16 %v230
    %v629 = vunpack.c.h.b16 %v230
    %v630 = vunpack.c.l.b16 %v231
    %v631 = vunpack.c.h.b16 %v231
    %v632 = vunpack.c.l.b16 %v232
    %v633 = vunpack.c.h.b16 %v232
    %v634 = vunpack.c.l.b16 %v233
    %v635 = vunpack.c.h.b16 %v233
    %v636 = vunpack.c.l.b16 %v234
    %v637 = vunpack.c.h.b16 %v234
    %v638 = vunpack.c.l.b16 %v235
    %v639 = vunpack.c.h.b16 %v235
    %v640 = vunpack.c.l.b16 %v236
    %v641 = vunpack.c.h.b16 %v236
    %v642 = vunpack.c.l.b16 %v237
    %v643 = vunpack.c.h.b16 %v237
    %v644 = vunpack.c.l.b16 %v238
    %v645 = vunpack.c.h.b16 %v238
    %v646 = vunpack.c.l.b16 %v239
    %v647 = vunpack.c.h.b16 %v239
    %v648 = vunpack.c.l.b16 %v240
    %v649 = vunpack.c.h.b16 %v240
    %v650 = vunpack.c.l.b16 %v241
    %v651 = vunpack.c.h.b16 %v241
    %v652 = vunpack.c.l.b16 %v242
    %v653 = vunpack.c.h.b16 %v242
    %v654 = vunpack.c.l.b16 %v243
    %v655 = vunpack.c.h.b16 %v243
    %v656 = vunpack.c.l.b16 %v244
    %v657 = vunpack.c.h.b16 %v244
    %v658 = vunpack.c.l.b16 %v245
    %v659 = vunpack.c.h.b16 %v245
    %v660 = vunpack.c.l.b16 %v246
    %v661 = vunpack.c.h.b16 %v246
    %v662 = vunpack.c.l.b16 %v247
    %v663 = vunpack.c.h.b16 %v247
    %v664 = vunpack.c.l.b16 %v248
    %v665 = vunpack.c.h.b16 %v248
    %v666 = vunpack.c.l.b16 %v249
    %v667 = vunpack.c.h.b16 %v249
    %v668 = vunpack.c.l.b16 %v250
    %v669 = vunpack.c.h.b16 %v250
    %v670 = vunpack.c.l.b16 %v251
    %v671 = vunpack.c.h.b16 %v251
    %v672 = vunpack.c.l.b16 %v252
    %v673 = vunpack.c.h.b16 %v252
    %v674 = vunpack.c.l.b16 %v253
    %v675 = vunpack.c.h.b16 %v253
    %v676 = vunpack.c.l.b16 %v254
    %v677 = vunpack.c.h.b16 %v254
    %v678 = vunpack.c.l.b16 %v255
    %v679 = vunpack.c.h.b16 %v255
    %v680 = vunpack.c.l.b16 %v256
    %v681 = vunpack.c.h.b16 %v256
    %v682 = vunpack.c.l.b16 %v257
    %v683 = vunpack.c.h.b16 %v257
    %v684 = vunpack.c.l.b16 %v258
    %v685 = vunpack.c.h.b16 %v258
    %v686 = vunpack.c.l.b16 %v259
    %v687 = vunpack.c.h.b16 %v259
    %v688 = vunpack.c.l.b16 %v260
    %v689 = vunpack.c.h.b16 %v260
    %v690 = vunpack.c.l.b16 %v261
    %v691 = vunpack.c.h.b16 %v261
    %v692 = vunpack.c.l.b16 %v262
    %v693 = vunpack.c.h.b16 %v262
    %v694 = vunpack.c.l.b16 %v263
    %v695 = vunpack.c.h.b16 %v263
    %v696 = vunpack.c.l.b16 %v264
    %v697 = vunpack.c.h.b16 %v264
    %v698 = vunpack.c.l.b16 %v265
    %v699 = vunpack.c.h.b16 %v265
    %v700 = vunpack.c.l.b16 %v266
    %v701 = vunpack.c.h.b16 %v266
    %v702 = vunpack.c.l.b16 %v267
    %v703 = vunpack.c.h.b16 %v267
    %v704 = vunpack.c.l.b16 %v268
    %v705 = vunpack.c.h.b16 %v268
    %v706 = vunpack.c.l.b16 %v269
    %v707 = vunpack.c.h.b16 %v269
    %v708 = vunpack.c.l.b16 %v270
    %v709 = vunpack.c.h.b16 %v270
    %v710 = vunpack.c.l.b16 %v271
    %v711 = vunpack.c.h.b16 %v271
    %v712 = vunpack.c.l.b16 %v272
    %v713 = vunpack.c.h.b16 %v272
    %v714 = vunpack.c.l.b16 %v273
    %v715 = vunpack.c.h.b16 %v273
    %v716 = vunpack.c.l.b16 %v274
    %v717 = vunpack.c.h.b16 %v274
    %v718 = vunpack.c.l.b16 %v275
    %v719 = vunpack.c.h.b16 %v275
    %v720 = vunpack.c.l.b16 %v276
    %v721 = vunpack.c.h.b16 %v276
    %v722 = vunpack.c.l.b16 %v277
    %v723 = vunpack.c.h.b16 %v277
    %v724 = vunpack.c.l.b16 %v278
    %v725 = vunpack.c.h.b16 %v278
    %v726 = vunpack.c.l.b16 %v279
    %v727 = vunpack.c.h.b16 %v279
    %v728 = vunpack.c.l.b16 %v280
    %v729 = vunpack.c.h.b16 %v280
    %v730 = vunpack.c.l.b16 %v281
    %v731 = vunpack.c.h.b16 %v281
    %v732 = vunpack.c.l.b16 %v282
    %v733 = vunpack.c.h.b16 %v282
    %v734 = vunpack.c.l.b16 %v283
    %v735 = vunpack.c.h.b16 %v283
    %v736 = vunpack.c.l.b16 %v284
    %v737 = vunpack.c.h.b16 %v284
    %v738 = vunpack.c.l.b16 %v285
    %v739 = vunpack.c.h.b16 %v285
    %v740 = vunpack.c.l.b16 %v286
    %v741 = vunpack.c.h.b16 %v286
    %v742 = vunpack.c.l.b16 %v287
    %v743 = vunpack.c.h.b16 %v287
    %v744 = vunpack.c.l.b16 %v288
    %v745 = vunpack.c.h.b16 %v288
    %v746 = vunpack.c.l.b16 %v289
    %v747 = vunpack.c.h.b16 %v289
    %v748 = vunpack.c.l.b16 %v290
    %v749 = vunpack.c.h.b16 %v290
    %v750 = vunpack.c.l.b16 %v291
    %v751 = vunpack.c.h.b16 %v291
    %v752 = vunpack.c.l.b16 %v292
    %v753 = vunpack.c.h.b16 %v292
    %v754 = vpack.c.b16 %v456, %v454
    %v755 = vpack.c.b16 %v457, %v455
    %v756 = vpack.c.b16 %v460, %v458
    %v757 = vpack.c.b16 %v461, %v459
    %v758 = vpack.c.b16 %v464, %v462
    %v759 = vpack.c.b16 %v465, %v463
    %v760 = vpack.c.b16 %v468, %v466
    %v761 = vpack.c.b16 %v469, %v467
    %v762 = vpack.c.b16 %v472, %v470
    %v763 = vpack.c.b16 %v473, %v471
    %v764 = vpack.c.b16 %v476, %v474
    %v765 = vpack.c.b16 %v477, %v475
    %v766 = vpack.c.b16 %v480, %v478
    %v767 = vpack.c.b16 %v481, %v479
    %v768 = vpack.c.b16 %v484, %v482
    %v769 = vpack.c.b16 %v485, %v483
    %v770 = vpack.c.b16 %v488, %v486
    %v771 = vpack.c.b16 %v489, %v487
    %v772 = vpack.c.b16 %v492, %v490
    %v773 = vpack.c.b16 %v493, %v491
    %v774 = vpack.c.b16 %v496, %v494
    %v775 = vpack.c.b16 %v497, %v495
    %v776 = vpack.c.b16 %v500, %v498
    %v777 = vpack.c.b16 %v501, %v499
    %v778 = vpack.c.b16 %v504, %v502
    %v779 = vpack.c.b16 %v505, %v503
    %v780 = vpack.c.b16 %v508, %v506
    %v781 = vpack.c.b16 %v509, %v507
    %v782 = vpack.c.b16 %v512, %v510
    %v783 = vpack.c.b16 %v513, %v511
    %v784 = vpack.c.b16 %v516, %v514
    %v785 = vpack.c.b16 %v517, %v515
    %v786 = vpack.c.b16 %v520, %v518
    %v787 = vpack.c.b16 %v521, %v519
    %v788 = vpack.c.b16 %v524, %v522
    %v789 = vpack.c.b16 %v525, %v523
    %v790 = vpack.c.b16 %v528, %v526
    %v791 = vpack.c.b16 %v529, %v527
    %v792 = vpack.c.b16 %v532, %v530
    %v793 = vpack.c.b16 %v533, %v531
    %v794 = vpack.c.b16 %v536, %v534
    %v795 = vpack.c.b16 %v537, %v535
    %v796 = vpack.c.b16 %v540, %v538
    %v797 = vpack.c.b16 %v541, %v539
    %v798 = vpack.c.b16 %v544, %v542
    %v799 = vpack.c.b16 %v545, %v543
    %v800 = vpack.c.b16 %v548, %v546
    %v801 = vpack.c.b16 %v549, %v547
    %v802 = vpack.c.b16 %v552, %v550
    %v803 = vpack.c.b16 %v553, %v551
    %v804 = vpack.c.b16 %v556, %v554
    %v805 = vpack.c.b16 %v557, %v555
    %v806 = vpack.c.b16 %v560, %v558
    %v807 = vpack.c.b16 %v561, %v559
    %v808 = vpack.c.b16 %v564, %v562
    %v809 = vpack.c.b16 %v565, %v563
    %v810 = vpack.c.b16 %v568, %v566
    %v811 = vpack.c.b16 %v569, %v567
    %v812 = vpack.c.b16 %v572, %v570
    %v813 = vpack.c.b16 %v573, %v571
    %v814 = vpack.c.b16 %v576, %v574
    %v815 = vpack.c.b16 %v577, %v575
    %v816 = vpack.c.b16 %v580, %v578
    %v817 = vpack.c.b16 %v581, %v579
    %v818 = vpack.c.b16 %v584, %v582
    %v819 = vpack.c.b16 %v585, %v583
    %v820 = vpack.c.b16 %v588, %v586
    %v821 = vpack.c.b16 %v589, %v587
    %v822 = vpack.c.b16 %v592, %v590
    %v823 = vpack.c.b16 %v593, %v591
    %v824 = vpack.c.b16 %v596, %v594
    %v825 = vpack.c.b16 %v597, %v595
    %v826 = vpack.c.b16 %v600, %v598
    %v827 = vpack.c.b16 %v601, %v599
    %v828 = vpack.c.b16 %v604, %v602
    %v829 = vpack.c.b16 %v605, %v603
    %v830 = vpack.c.b16 %v608, %v606
    %v831 = vpack.c.b16 %v609, %v607
    %v832 = vpack.c.b16 %v612, %v610
    %v833 = vpack.c.b16 %v613, %v611
    %v834 = vpack.c.b16 %v616, %v614
    %v835 = vpack.c.b16 %v617, %v615
    %v836 = vpack.c.b16 %v620, %v618
    %v837 = vpack.c.b16 %v621, %v619
    %v838 = vpack.c.b16 %v624, %v622
    %v839 = vpack.c.b16 %v625, %v623
    %v840 = vpack.c.b16 %v628, %v626
    %v841 = vpack.c.b16 %v629, %v627
    %v842 = vpack.c.b16 %v632, %v630
    %v843 = vpack.c.b16 %v633, %v631
    %v844 = vpack.c.b16 %v636, %v634
    %v845 = vpack.c.b16 %v637, %v635
    %v846 = vpack.c.b16 %v640, %v638
    %v847 = vpack.c.b16 %v641, %v639
    %v848 = vpack.c.b16 %v644, %v642
    %v849 = vpack.c.b16 %v645, %v643
    %v850 = vpack.c.b16 %v648, %v646
    %v851 = vpack.c.b16 %v649, %v647
    %v852 = vpack.c.b16 %v652, %v650
    %v853 = vpack.c.b16 %v653, %v651
    %v854 = vpack.c.b16 %v656, %v654
    %v855 = vpack.c.b16 %v657, %v655
    %v856 = vpack.c.b16 %v660, %v658
    %v857 = vpack.c.b16 %v661, %v659
    %v858 = vpack.c.b16 %v664, %v662
    %v859 = vpack.c.b16 %v665, %v663
    %v860 = vpack.c.b16 %v668, %v666
    %v861 = vpack.c.b16 %v669, %v667
    %v862 = vpack.c.b16 %v672, %v670
    %v863 = vpack.c.b16 %v673, %v671
    %v864 = vpack.c.b16 %v676, %v674
    %v865 = vpack.c.b16 %v677, %v675
    %v866 = vpack.c.b16 %v680, %v678
    %v867 = vpack.c.b16 %v681, %v679
    %v868 = vpack.c.b16 %v684, %v682
    %v869 = vpack.c.b16 %v685, %v683
    %v870 = vpack.c.b16 %v688, %v686
    %v871 = vpack.c.b16 %v689, %v687
    %v872 = vpack.c.b16 %v692, %v690
    %v873 = vpack.c.b16 %v693, %v691
    %v874 = vpack.c.b16 %v696, %v694
    %v875 = vpack.c.b16 %v697, %v695
    %v876 = vpack.c.b16 %v700, %v698
    %v877 = vpack.c.b16 %v701, %v699
    %v878 = vpack.c.b16 %v704, %v702
    %v879 = vpack.c.b16 %v705, %v703
    %v880 = vpack.c.b16 %v708, %v706
    %v881 = vpack.c.b16 %v709, %v707
    %v882 = vpack.c.b16 %v712, %v710
    %v883 = vpack.c.b16 %v713, %v711
    %v884 = vpack.c.b16 %v716, %v714
    %v885 = vpack.c.b16 %v717, %v715
    %v886 = vpack.c.b16 %v720, %v718
    %v887 = vpack.c.b16 %v721, %v719
    %v888 = vpack.c.b16 %v724, %v722
    %v889 = vpack.c.b16 %v725, %v723
    %v890 = vpack.c.b16 %v728, %v726
    %v891 = vpack.c.b16 %v729, %v727
    %v892 = vpack.c.b16 %v732, %v730
    %v893 = vpack.c.b16 %v733, %v731
    %v894 = vpack.c.b16 %v736, %v734
    %v895 = vpack.c.b16 %v737, %v735
    %v896 = vpack.c.b16 %v740, %v738
    %v897 = vpack.c.b16 %v741, %v739
    %v898 = vpack.c.b16 %v744, %v742
    %v899 = vpack.c.b16 %v745, %v743
    %v900 = vpack.c.b16 %v748, %v746
    %v901 = vpack.c.b16 %v749, %v747
    %v902 = vpack.c.b16 %v752, %v750
    %v903 = vpack.c.b16 %v753, %v751
    %vm1054 = vcmask 392192
    %v1056 = vsel %vm1054, %v137, 0
    %1058 = vmatprep.subr.bf16.mxu0 %v755
    %1059 = vmatpush1.bf16.msra.mxu0 %v754
    %1060 = vmatprep.subr.bf16.mxu0 %v757
    %1061 = vmatpush1.bf16.msra.mxu0 %v756
    %1062 = vmatprep.subr.bf16.mxu0 %v759
    %1063 = vmatpush1.bf16.msra.mxu0 %v758
    %1064 = vmatprep.subr.bf16.mxu0 %v761
    %1065 = vmatpush1.bf16.msra.mxu0 %v760
    %1066 = vmatprep.subr.bf16.mxu0 %v763
    %1067 = vmatpush1.bf16.msra.mxu0 %v762
    %1068 = vmatprep.subr.bf16.mxu0 %v765
    %1069 = vmatpush1.bf16.msra.mxu0 %v764
    %1070 = vmatprep.subr.bf16.mxu0 %v767
    %1071 = vmatpush1.bf16.msra.mxu0 %v766
    %1072 = vmatprep.subr.bf16.mxu0 %v769
    %1073 = vmatpush1.bf16.msra.mxu0 %v768
    %1074 = vmatprep.subr.bf16.mxu0 %v771
    %1075 = vmatpush1.bf16.msra.mxu0 %v770
    %1076 = vmatprep.subr.bf16.mxu0 %v773
    %1077 = vmatpush1.bf16.msra.mxu0 %v772
    %1078 = vmatprep.subr.bf16.mxu0 %v775
    %1079 = vmatpush1.bf16.msra.mxu0 %v774
    %1080 = vmatprep.subr.bf16.mxu0 %v777
    %1081 = vmatpush1.bf16.msra.mxu0 %v776
    %1082 = vmatprep.subr.bf16.mxu0 %v779
    %1083 = vmatpush1.bf16.msra.mxu0 %v778
    %1084 = vmatprep.subr.bf16.mxu0 %v781
    %1085 = vmatpush1.bf16.msra.mxu0 %v780
    %1086 = vmatprep.subr.bf16.mxu0 %v783
    %1087 = vmatpush1.bf16.msra.mxu0 %v782
    %1088 = vmatprep.subr.bf16.mxu0 %v785
    %1089 = vmatpush1.bf16.msra.mxu0 %v784
    %1090 = vmatprep.mubr.bf16.mxu0 %v129
    %1091 = vmatmul.mubr.bf16.gmra.mrb[0].mxu0 %v128
    %v1092 = vpop.f32.mrb[0].mxu0
    %v1093 = vadd.f32 %v297, %v1092
    %v1094 = vpop.f32.mrb[0].mxu0
    %v1095 = vadd.f32 %v301, %v1094
    %v1096 = vpop.f32.mrb[0].mxu0
    %v1097 = vpop.f32.mrb[0].mxu0
    %1098 = vdwg.mxu0
    %1099 = vmatprep.subr.bf16.mxu0 %v787
    %1100 = vmatpush1.bf16.msra.mxu0 %v786
    %1101 = vmatprep.subr.bf16.mxu0 %v789
    %1102 = vmatpush1.bf16.msra.mxu0 %v788
    %1103 = vmatprep.subr.bf16.mxu0 %v791
    %1104 = vmatpush1.bf16.msra.mxu0 %v790
    %1105 = vmatprep.subr.bf16.mxu0 %v793
    %1106 = vmatpush1.bf16.msra.mxu0 %v792
    %1107 = vmatprep.subr.bf16.mxu0 %v795
    %1108 = vmatpush1.bf16.msra.mxu0 %v794
    %1109 = vmatprep.subr.bf16.mxu0 %v797
    %1110 = vmatpush1.bf16.msra.mxu0 %v796
    %1111 = vmatprep.subr.bf16.mxu0 %v799
    %1112 = vmatpush1.bf16.msra.mxu0 %v798
    %1113 = vmatprep.subr.bf16.mxu0 %v801
    %1114 = vmatpush1.bf16.msra.mxu0 %v800
    %1115 = vmatprep.subr.bf16.mxu0 %v803
    %1116 = vmatpush1.bf16.msra.mxu0 %v802
    %1117 = vmatprep.subr.bf16.mxu0 %v805
    %1118 = vmatpush1.bf16.msra.mxu0 %v804
    %1119 = vmatprep.subr.bf16.mxu0 %v807
    %1120 = vmatpush1.bf16.msra.mxu0 %v806
    %1121 = vmatprep.subr.bf16.mxu0 %v809
    %1122 = vmatpush1.bf16.msra.mxu0 %v808
    %1123 = vmatprep.subr.bf16.mxu0 %v811
    %1124 = vmatpush1.bf16.msra.mxu0 %v810
    %1125 = vmatprep.subr.bf16.mxu0 %v813
    %1126 = vmatpush1.bf16.msra.mxu0 %v812
    %1127 = vmatprep.subr.bf16.mxu0 %v815
    %1128 = vmatpush1.bf16.msra.mxu0 %v814
    %1129 = vmatprep.subr.bf16.mxu0 %v817
    %1130 = vmatpush1.bf16.msra.mxu0 %v816
    %1131 = vmatprep.mubr.bf16.mxu0 %v131
    %1132 = vmatmul.mubr.bf16.gmra.mrb[0].mxu0 %v130
    %v1133 = vpop.f32.mrb[0].mxu0
    %v1134 = vadd.f32 %v1093, %v1133
    %v1135 = vpop.f32.mrb[0].mxu0
    %v1136 = vadd.f32 %v1095, %v1135
    %v1137 = vpop.f32.mrb[0].mxu0
    %v1138 = vpop.f32.mrb[0].mxu0
    %1139 = vdwg.mxu0
    %1140 = vmatprep.subr.bf16.mxu0 %v819
    %1141 = vmatpush1.bf16.msra.mxu0 %v818
    %1142 = vmatprep.subr.bf16.mxu0 %v821
    %1143 = vmatpush1.bf16.msra.mxu0 %v820
    %1144 = vmatprep.subr.bf16.mxu0 %v823
    %1145 = vmatpush1.bf16.msra.mxu0 %v822
    %1146 = vmatprep.subr.bf16.mxu0 %v825
    %1147 = vmatpush1.bf16.msra.mxu0 %v824
    %1148 = vmatprep.subr.bf16.mxu0 %v827
    %1149 = vmatpush1.bf16.msra.mxu0 %v826
    %1150 = vmatprep.subr.bf16.mxu0 %v829
    %1151 = vmatpush1.bf16.msra.mxu0 %v828
    %1152 = vmatprep.subr.bf16.mxu0 %v831
    %1153 = vmatpush1.bf16.msra.mxu0 %v830
    %1154 = vmatprep.subr.bf16.mxu0 %v833
    %1155 = vmatpush1.bf16.msra.mxu0 %v832
    %1156 = vmatprep.subr.bf16.mxu0 %v835
    %1157 = vmatpush1.bf16.msra.mxu0 %v834
    %1158 = vmatprep.subr.bf16.mxu0 %v837
    %1159 = vmatpush1.bf16.msra.mxu0 %v836
    %1160 = vmatprep.subr.bf16.mxu0 %v839
    %1161 = vmatpush1.bf16.msra.mxu0 %v838
    %1162 = vmatprep.subr.bf16.mxu0 %v841
    %1163 = vmatpush1.bf16.msra.mxu0 %v840
    %1164 = vmatprep.subr.bf16.mxu0 %v843
    %1165 = vmatpush1.bf16.msra.mxu0 %v842
    %1166 = vmatprep.subr.bf16.mxu0 %v845
    %1167 = vmatpush1.bf16.msra.mxu0 %v844
    %1168 = vmatprep.subr.bf16.mxu0 %v847
    %1169 = vmatpush1.bf16.msra.mxu0 %v846
    %1170 = vmatprep.subr.bf16.mxu0 %v849
    %1171 = vmatpush1.bf16.msra.mxu0 %v848
    %1172 = vmatprep.mubr.bf16.mxu0 %v133
    %1173 = vmatmul.mubr.bf16.gmra.mrb[0].mxu0 %v132
    %v1174 = vpop.f32.mrb[0].mxu0
    %v1175 = vadd.f32 %v1134, %v1174
    %v1176 = vpop.f32.mrb[0].mxu0
    %v1177 = vadd.f32 %v1136, %v1176
    %v1178 = vpop.f32.mrb[0].mxu0
    %v1179 = vpop.f32.mrb[0].mxu0
    %1180 = vdwg.mxu0
    %1181 = vmatprep.subr.bf16.mxu0 %v851
    %1182 = vmatpush1.bf16.msra.mxu0 %v850
    %1183 = vmatprep.subr.bf16.mxu0 %v853
    %1184 = vmatpush1.bf16.msra.mxu0 %v852
    %1185 = vmatprep.subr.bf16.mxu0 %v855
    %1186 = vmatpush1.bf16.msra.mxu0 %v854
    %1187 = vmatprep.subr.bf16.mxu0 %v857
    %1188 = vmatpush1.bf16.msra.mxu0 %v856
    %1189 = vmatprep.subr.bf16.mxu0 %v859
    %1190 = vmatpush1.bf16.msra.mxu0 %v858
    %1191 = vmatprep.subr.bf16.mxu0 %v861
    %1192 = vmatpush1.bf16.msra.mxu0 %v860
    %1193 = vmatprep.subr.bf16.mxu0 %v863
    %1194 = vmatpush1.bf16.msra.mxu0 %v862
    %1195 = vmatprep.subr.bf16.mxu0 %v865
    %1196 = vmatpush1.bf16.msra.mxu0 %v864
    %1197 = vmatprep.subr.bf16.mxu0 %v867
    %1198 = vmatpush1.bf16.msra.mxu0 %v866
    %1199 = vmatprep.subr.bf16.mxu0 %v869
    %1200 = vmatpush1.bf16.msra.mxu0 %v868
    %1201 = vmatprep.subr.bf16.mxu0 %v871
    %1202 = vmatpush1.bf16.msra.mxu0 %v870
    %1203 = vmatprep.subr.bf16.mxu0 %v873
    %1204 = vmatpush1.bf16.msra.mxu0 %v872
    %1205 = vmatprep.subr.bf16.mxu0 %v875
    %1206 = vmatpush1.bf16.msra.mxu0 %v874
    %1207 = vmatprep.subr.bf16.mxu0 %v877
    %1208 = vmatpush1.bf16.msra.mxu0 %v876
    %1209 = vmatprep.subr.bf16.mxu0 %v879
    %1210 = vmatpush1.bf16.msra.mxu0 %v878
    %1211 = vmatprep.subr.bf16.mxu0 %v881
    %1212 = vmatpush1.bf16.msra.mxu0 %v880
    %1213 = vmatprep.mubr.bf16.mxu0 %v135
    %1214 = vmatmul.mubr.bf16.gmra.mrb[0].mxu0 %v134
    %v1215 = vpop.f32.mrb[0].mxu0
    %v1216 = vadd.f32 %v1175, %v1215
    %v1217 = vpop.f32.mrb[0].mxu0
    %v1218 = vadd.f32 %v1177, %v1217
    %v1219 = vpop.f32.mrb[0].mxu0
    %v1220 = vpop.f32.mrb[0].mxu0
    %1221 = vdwg.mxu0
    %1222 = vmatprep.subr.bf16.mxu0 %v883
    %1223 = vmatpush1.bf16.msra.mxu0 %v882
    %1224 = vmatprep.subr.bf16.mxu0 %v885
    %1225 = vmatpush1.bf16.msra.mxu0 %v884
    %1226 = vmatprep.subr.bf16.mxu0 %v887
    %1227 = vmatpush1.bf16.msra.mxu0 %v886
    %1228 = vmatprep.subr.bf16.mxu0 %v889
    %1229 = vmatpush1.bf16.msra.mxu0 %v888
    %1230 = vmatprep.subr.bf16.mxu0 %v891
    %1231 = vmatpush1.bf16.msra.mxu0 %v890
    %1232 = vmatprep.subr.bf16.mxu0 %v893
    %1233 = vmatpush1.bf16.msra.mxu0 %v892
    %1234 = vmatprep.subr.bf16.mxu0 %v895
    %1235 = vmatpush1.bf16.msra.mxu0 %v894
    %1236 = vmatprep.subr.bf16.mxu0 %v897
    %1237 = vmatpush1.bf16.msra.mxu0 %v896
    %1238 = vmatprep.subr.bf16.mxu0 %v899
    %1239 = vmatpush1.bf16.msra.mxu0 %v898
    %1240 = vmatprep.subr.bf16.mxu0 %v901
    %1241 = vmatpush1.bf16.msra.mxu0 %v900
    %1242 = vmatprep.subr.bf16.mxu0 %v903
    %1243 = vmatpush1.bf16.msra.mxu0 %v902
    %1244 = vmatprep.subr.bf16.mxu0 0
    %1245 = vmatpush1.bf16.msra.mxu0 0
    %1246 = vmatprep.subr.bf16.mxu0 0
    %1247 = vmatpush1.bf16.msra.mxu0 0
    %1248 = vmatprep.subr.bf16.mxu0 0
    %1249 = vmatpush1.bf16.msra.mxu0 0
    %1250 = vmatprep.subr.bf16.mxu0 0
    %1251 = vmatpush1.bf16.msra.mxu0 0
    %1252 = vmatprep.subr.bf16.mxu0 0
    %1253 = vmatpush1.bf16.msra.mxu0 0
    %1254 = vmatprep.mubr.bf16.mxu0 %v1056
    %1255 = vmatmul.mubr.bf16.gmra.mrb[0].mxu0 %v136
    %v1256 = vpop.f32.mrb[0].mxu0
    %v1257 = vadd.f32 %v1216, %v1256
    %v1258 = vpop.f32.mrb[0].mxu0
    %v1259 = vadd.f32 %v1218, %v1258
    %v1260 = vpop.f32.mrb[0].mxu0
    %v1261 = vpop.f32.mrb[0].mxu0
    %1262 = vdwg.mxu0
    %v1263 = vmax.f32 %v1257, 0.0
    %v1264 = vmax.f32 %v1259, 0.0
    %v1265 = vpack.c.bf16 %v1263, %v1263
    %v1266 = vpack.c.bf16 %v1264, %v1264
    %v1267 = vld [vmem:[#allocation7] sm:$0xf]
    %v1268 = vld [vmem:[#allocation7 + $0x4] sm:$0xf]
    %v1269 = vld [vmem:[#allocation7 + $0x8] sm:$0xf]
    %v1270 = vld [vmem:[#allocation7 + $0xc] sm:$0xf]
    %v1271 = vld [vmem:[#allocation7 + $0x10] sm:$0xf]
    %v1272 = vld [vmem:[#allocation7 + $0x14] sm:$0xf]
    %v1273 = vld [vmem:[#allocation7 + $0x18] sm:$0xf]
    %v1274 = vld [vmem:[#allocation7 + $0x1c] sm:$0xf]
    %v1275 = vld [vmem:[#allocation7 + $0x20] sm:$0xf]
    %v1276 = vld [vmem:[#allocation7 + $0x24] sm:$0xf]
    %v1277 = vld [vmem:[#allocation7 + $0x28] sm:$0xf]
    %v1278 = vld [vmem:[#allocation7 + $0x2c] sm:$0xf]
    %v1279 = vld [vmem:[#allocation7 + $0x30] sm:$0xf]
    %v1280 = vld [vmem:[#allocation7 + $0x34] sm:$0xf]
    %v1281 = vld [vmem:[#allocation7 + $0x38] sm:$0xf]
    %v1282 = vld [vmem:[#allocation7 + $0x3c] sm:$0xf]
    %v1283 = vld [vmem:[#allocation7 + $0x40] sm:$0xf]
    %v1284 = vld [vmem:[#allocation7 + $0x44] sm:$0xf]
    %v1285 = vld [vmem:[#allocation7 + $0x48] sm:$0xf]
    %v1286 = vld [vmem:[#allocation7 + $0x4c] sm:$0xf]
    %v1287 = vld [vmem:[#allocation7 + $0x50] sm:$0xf]
    %v1288 = vld [vmem:[#allocation7 + $0x54] sm:$0xf]
    %v1289 = vld [vmem:[#allocation7 + $0x58] sm:$0xf]
    %v1290 = vld [vmem:[#allocation7 + $0x5c] sm:$0xf]
    %v1291 = vld [vmem:[#allocation7 + $0x60] sm:$0xf]
    %v1292 = vld [vmem:[#allocation7 + $0x64] sm:$0xf]
    %v1293 = vld [vmem:[#allocation7 + $0x68] sm:$0xf]
    %v1294 = vld [vmem:[#allocation7 + $0x6c] sm:$0xf]
    %v1295 = vld [vmem:[#allocation7 + $0x70] sm:$0xf]
    %v1296 = vld [vmem:[#allocation7 + $0x74] sm:$0xf]
    %v1297 = vld [vmem:[#allocation7 + $0x78] sm:$0xf]
    %v1298 = vld [vmem:[#allocation7 + $0x7c] sm:$0xf]
    %v1331 = vunpack.c.l.b16 %v1267
    %v1332 = vunpack.c.l.b16 %v1268
    %v1333 = vunpack.c.l.b16 %v1269
    %v1334 = vunpack.c.l.b16 %v1270
    %v1335 = vunpack.c.l.b16 %v1271
    %v1336 = vunpack.c.l.b16 %v1272
    %v1337 = vunpack.c.l.b16 %v1273
    %v1338 = vunpack.c.l.b16 %v1274
    %v1339 = vunpack.c.l.b16 %v1275
    %v1340 = vunpack.c.l.b16 %v1276
    %v1341 = vunpack.c.l.b16 %v1277
    %v1342 = vunpack.c.l.b16 %v1278
    %v1343 = vunpack.c.l.b16 %v1279
    %v1344 = vunpack.c.l.b16 %v1280
    %v1345 = vunpack.c.l.b16 %v1281
    %v1346 = vunpack.c.l.b16 %v1282
    %v1347 = vunpack.c.l.b16 %v1283
    %v1348 = vunpack.c.l.b16 %v1284
    %v1349 = vunpack.c.l.b16 %v1285
    %v1350 = vunpack.c.l.b16 %v1286
    %v1351 = vunpack.c.l.b16 %v1287
    %v1352 = vunpack.c.l.b16 %v1288
    %v1353 = vunpack.c.l.b16 %v1289
    %v1354 = vunpack.c.l.b16 %v1290
    %v1355 = vunpack.c.l.b16 %v1291
    %v1356 = vunpack.c.l.b16 %v1292
    %v1357 = vunpack.c.l.b16 %v1293
    %v1358 = vunpack.c.l.b16 %v1294
    %v1359 = vunpack.c.l.b16 %v1295
    %v1360 = vunpack.c.l.b16 %v1296
    %v1361 = vunpack.c.l.b16 %v1297
    %v1362 = vunpack.c.l.b16 %v1298
    %v1363 = vpack.c.b16 %v1332, %v1331
    %v1364 = vpack.c.b16 %v1334, %v1333
    %v1365 = vpack.c.b16 %v1336, %v1335
    %v1366 = vpack.c.b16 %v1338, %v1337
    %v1367 = vpack.c.b16 %v1340, %v1339
    %v1368 = vpack.c.b16 %v1342, %v1341
    %v1369 = vpack.c.b16 %v1344, %v1343
    %v1370 = vpack.c.b16 %v1346, %v1345
    %v1371 = vpack.c.b16 %v1348, %v1347
    %v1372 = vpack.c.b16 %v1350, %v1349
    %v1373 = vpack.c.b16 %v1352, %v1351
    %v1374 = vpack.c.b16 %v1354, %v1353
    %v1375 = vpack.c.b16 %v1356, %v1355
    %v1376 = vpack.c.b16 %v1358, %v1357
    %v1377 = vpack.c.b16 %v1360, %v1359
    %v1378 = vpack.c.b16 %v1362, %v1361
    %1395 = vmatprep.subr.bf16.mxu0 0
    %1396 = vmatpush1.bf16.msra.mxu0 %v1363
    %1397 = vmatprep.subr.bf16.mxu0 0
    %1398 = vmatpush1.bf16.msra.mxu0 %v1364
    %1399 = vmatprep.subr.bf16.mxu0 0
    %1400 = vmatpush1.bf16.msra.mxu0 %v1365
    %1401 = vmatprep.subr.bf16.mxu0 0
    %1402 = vmatpush1.bf16.msra.mxu0 %v1366
    %1403 = vmatprep.subr.bf16.mxu0 0
    %1404 = vmatpush1.bf16.msra.mxu0 %v1367
    %1405 = vmatprep.subr.bf16.mxu0 0
    %1406 = vmatpush1.bf16.msra.mxu0 %v1368
    %1407 = vmatprep.subr.bf16.mxu0 0
    %1408 = vmatpush1.bf16.msra.mxu0 %v1369
    %1409 = vmatprep.subr.bf16.mxu0 0
    %1410 = vmatpush1.bf16.msra.mxu0 %v1370
    %1411 = vmatprep.subr.bf16.mxu0 0
    %1412 = vmatpush1.bf16.msra.mxu0 %v1371
    %1413 = vmatprep.subr.bf16.mxu0 0
    %1414 = vmatpush1.bf16.msra.mxu0 %v1372
    %1415 = vmatprep.subr.bf16.mxu0 0
    %1416 = vmatpush1.bf16.msra.mxu0 %v1373
    %1417 = vmatprep.subr.bf16.mxu0 0
    %1418 = vmatpush1.bf16.msra.mxu0 %v1374
    %1419 = vmatprep.subr.bf16.mxu0 0
    %1420 = vmatpush1.bf16.msra.mxu0 %v1375
    %1421 = vmatprep.subr.bf16.mxu0 0
    %1422 = vmatpush1.bf16.msra.mxu0 %v1376
    %1423 = vmatprep.subr.bf16.mxu0 0
    %1424 = vmatpush1.bf16.msra.mxu0 %v1377
    %1425 = vmatprep.subr.bf16.mxu0 0
    %1426 = vmatpush1.bf16.msra.mxu0 %v1378
    %1427 = vmatprep.mubr.bf16.mxu0 %v1266
    %1428 = vmatmul.mubr.bf16.gmra.mrb[0].mxu0 %v1265
    %v1429 = vpop.f32.mrb[0].mxu0
    %v1430 = vadd.f32 %v139, %v1429
    %v1431 = vpop.f32.mrb[0].mxu0
    %v1432 = vpop.f32.mrb[0].mxu0
    %v1433 = vpop.f32.mrb[0].mxu0
    %1434 = vdwg.mxu0
    %v1435 = vmax.f32 %v1430, 0.0
    %v1436 = vpack.c.bf16 %v1435, %v1435
    %v1437 = vld [vmem:[#allocation7 + $0x80] sm:$0xf]
    %v1438 = vld [vmem:[#allocation7 + $0x84] sm:$0xf]
    %v1439 = vld [vmem:[#allocation7 + $0x88] sm:$0xf]
    %v1440 = vld [vmem:[#allocation7 + $0x8c] sm:$0xf]
    %v1441 = vld [vmem:[#allocation7 + $0x90] sm:$0xf]
    %v1442 = vld [vmem:[#allocation7 + $0x94] sm:$0xf]
    %v1443 = vld [vmem:[#allocation7 + $0x98] sm:$0xf]
    %v1444 = vld [vmem:[#allocation7 + $0x9c] sm:$0xf]
    %v1445 = vld [vmem:[#allocation7 + $0xa0] sm:$0xf]
    %v1446 = vld [vmem:[#allocation7 + $0xa4] sm:$0xf]
    %v1447 = vld [vmem:[#allocation7 + $0xa8] sm:$0xf]
    %v1448 = vld [vmem:[#allocation7 + $0xac] sm:$0xf]
    %v1449 = vld [vmem:[#allocation7 + $0xb0] sm:$0xf]
    %v1450 = vld [vmem:[#allocation7 + $0xb4] sm:$0xf]
    %v1451 = vld [vmem:[#allocation7 + $0xb8] sm:$0xf]
    %v1452 = vld [vmem:[#allocation7 + $0xbc] sm:$0xf]
    %v1469 = vunpack.c.l.b16 %v1437
    %v1470 = vunpack.c.l.b16 %v1438
    %v1471 = vunpack.c.l.b16 %v1439
    %v1472 = vunpack.c.l.b16 %v1440
    %v1473 = vunpack.c.l.b16 %v1441
    %v1474 = vunpack.c.l.b16 %v1442
    %v1475 = vunpack.c.l.b16 %v1443
    %v1476 = vunpack.c.l.b16 %v1444
    %v1477 = vunpack.c.l.b16 %v1445
    %v1478 = vunpack.c.l.b16 %v1446
    %v1479 = vunpack.c.l.b16 %v1447
    %v1480 = vunpack.c.l.b16 %v1448
    %v1481 = vunpack.c.l.b16 %v1449
    %v1482 = vunpack.c.l.b16 %v1450
    %v1483 = vunpack.c.l.b16 %v1451
    %v1484 = vunpack.c.l.b16 %v1452
    %v1485 = vpack.c.b16 %v1470, %v1469
    %v1486 = vpack.c.b16 %v1472, %v1471
    %v1487 = vpack.c.b16 %v1474, %v1473
    %v1488 = vpack.c.b16 %v1476, %v1475
    %v1489 = vpack.c.b16 %v1478, %v1477
    %v1490 = vpack.c.b16 %v1480, %v1479
    %v1491 = vpack.c.b16 %v1482, %v1481
    %v1492 = vpack.c.b16 %v1484, %v1483
    %1501 = vmatprep.subr.bf16.mxu0 0
    %1502 = vmatpush1.bf16.msra.mxu0 %v1485
    %1503 = vmatprep.subr.bf16.mxu0 0
    %1504 = vmatpush1.bf16.msra.mxu0 %v1486
    %1505 = vmatprep.subr.bf16.mxu0 0
    %1506 = vmatpush1.bf16.msra.mxu0 %v1487
    %1507 = vmatprep.subr.bf16.mxu0 0
    %1508 = vmatpush1.bf16.msra.mxu0 %v1488
    %1509 = vmatprep.subr.bf16.mxu0 0
    %1510 = vmatpush1.bf16.msra.mxu0 %v1489
    %1511 = vmatprep.subr.bf16.mxu0 0
    %1512 = vmatpush1.bf16.msra.mxu0 %v1490
    %1513 = vmatprep.subr.bf16.mxu0 0
    %1514 = vmatpush1.bf16.msra.mxu0 %v1491
    %1515 = vmatprep.subr.bf16.mxu0 0
    %1516 = vmatpush1.bf16.msra.mxu0 %v1492
    %1517 = vmatprep.subr.bf16.mxu0 0
    %1518 = vmatpush1.bf16.msra.mxu0 0
    %1519 = vmatprep.subr.bf16.mxu0 0
    %1520 = vmatpush1.bf16.msra.mxu0 0
    %1521 = vmatprep.subr.bf16.mxu0 0
    %1522 = vmatpush1.bf16.msra.mxu0 0
    %1523 = vmatprep.subr.bf16.mxu0 0
    %1524 = vmatpush1.bf16.msra.mxu0 0
    %1525 = vmatprep.subr.bf16.mxu0 0
    %1526 = vmatpush1.bf16.msra.mxu0 0
    %1527 = vmatprep.subr.bf16.mxu0 0
    %1528 = vmatpush1.bf16.msra.mxu0 0
    %1529 = vmatprep.subr.bf16.mxu0 0
    %1530 = vmatpush1.bf16.msra.mxu0 0
    %1531 = vmatprep.subr.bf16.mxu0 0
    %1532 = vmatpush1.bf16.msra.mxu0 0
    %1533 = vmatprep.mubr.bf16.mxu0 0
    %1534 = vmatmul.mubr.bf16.gmra.mrb[0].mxu0 %v1436
    %v1535 = vpop.f32.mrb[0].mxu0
    %v1536 = vadd.f32 %v140, %v1535
    %v1537 = vpop.f32.mrb[0].mxu0
    %v1538 = vpop.f32.mrb[0].mxu0
    %v1539 = vpop.f32.mrb[0].mxu0
    %1540 = vdwg.mxu0
    %v1541 = vmax.f32 %v1536, 0.0
    %v1542 = vpack.c.bf16 %v1541, %v1541
    %v1543 = vld [vmem:[#allocation7 + $0xc0] sm:$0xf]
    %v1544 = vld [vmem:[#allocation7 + $0xc4] sm:$0xf]
    %v1545 = vld [vmem:[#allocation7 + $0xc8] sm:$0xf]
    %v1546 = vld [vmem:[#allocation7 + $0xcc] sm:$0xf]
    %v1547 = vld [vmem:[#allocation7 + $0xd0] sm:$0xf]
    %v1548 = vld [vmem:[#allocation7 + $0xd4] sm:$0xf]
    %v1549 = vld [vmem:[#allocation7 + $0xd8] sm:$0xf]
    %v1550 = vld [vmem:[#allocation7 + $0xdc] sm:$0xf]
    %v1559 = vunpack.c.l.b16 %v1543
    %v1560 = vunpack.c.l.b16 %v1544
    %v1561 = vunpack.c.l.b16 %v1545
    %v1562 = vunpack.c.l.b16 %v1546
    %v1563 = vunpack.c.l.b16 %v1547
    %v1564 = vunpack.c.l.b16 %v1548
    %v1565 = vunpack.c.l.b16 %v1549
    %v1566 = vunpack.c.l.b16 %v1550
    %v1567 = vpack.c.b16 %v1560, %v1559
    %v1568 = vpack.c.b16 %v1562, %v1561
    %v1569 = vpack.c.b16 %v1564, %v1563
    %v1570 = vpack.c.b16 %v1566, %v1565
    %vm1575 = vcmask 523264
    %v1577 = vsel %vm1575, %v1542, 0
    %1579 = vmatprep.subr.bf16.mxu0 0
    %1580 = vmatpush1.bf16.msra.mxu0 %v1567
    %1581 = vmatprep.subr.bf16.mxu0 0
    %1582 = vmatpush1.bf16.msra.mxu0 %v1568
    %1583 = vmatprep.subr.bf16.mxu0 0
    %1584 = vmatpush1.bf16.msra.mxu0 %v1569
    %1585 = vmatprep.subr.bf16.mxu0 0
    %1586 = vmatpush1.bf16.msra.mxu0 %v1570
    %1587 = vmatprep.subr.bf16.mxu0 0
    %1588 = vmatpush1.bf16.msra.mxu0 0
    %1589 = vmatprep.subr.bf16.mxu0 0
    %1590 = vmatpush1.bf16.msra.mxu0 0
    %1591 = vmatprep.subr.bf16.mxu0 0
    %1592 = vmatpush1.bf16.msra.mxu0 0
    %1593 = vmatprep.subr.bf16.mxu0 0
    %1594 = vmatpush1.bf16.msra.mxu0 0
    %1595 = vmatprep.subr.bf16.mxu0 0
    %1596 = vmatpush1.bf16.msra.mxu0 0
    %1597 = vmatprep.subr.bf16.mxu0 0
    %1598 = vmatpush1.bf16.msra.mxu0 0
    %1599 = vmatprep.subr.bf16.mxu0 0
    %1600 = vmatpush1.bf16.msra.mxu0 0
    %1601 = vmatprep.subr.bf16.mxu0 0
    %1602 = vmatpush1.bf16.msra.mxu0 0
    %1603 = vmatprep.subr.bf16.mxu0 0
    %1604 = vmatpush1.bf16.msra.mxu0 0
    %1605 = vmatprep.subr.bf16.mxu0 0
    %1606 = vmatpush1.bf16.msra.mxu0 0
    %1607 = vmatprep.subr.bf16.mxu0 0
    %1608 = vmatpush1.bf16.msra.mxu0 0
    %1609 = vmatprep.subr.bf16.mxu0 0
    %1610 = vmatpush1.bf16.msra.mxu0 0
    %1611 = vmatprep.mubr.bf16.mxu0 0
    %1612 = vmatmul.mubr.bf16.gmra.mrb[0].mxu0 %v1577
    %v1613 = vpop.f32.mrb[0].mxu0
    %v1614 = vadd.f32 %v141, %v1613
    %v1615 = vpop.f32.mrb[0].mxu0
    %v1616 = vpop.f32.mrb[0].mxu0
    %v1617 = vpop.f32.mrb[0].mxu0
    %1618 = vdwg.mxu0
    %v1619 = vmax.f32 %v1614, 0.0
    %v1620 = vpack.c.bf16 %v1619, %v1619
    %v1621 = vld [vmem:[#allocation7 + $0xe0] sm:$0xf]
    %v1622 = vld [vmem:[#allocation7 + $0xe4] sm:$0xf]
    %v1623 = vld [vmem:[#allocation7 + $0xe8] sm:$0xf]
    %v1624 = vld [vmem:[#allocation7 + $0xec] sm:$0xf]
    %v1629 = vunpack.c.l.b16 %v1621
    %v1630 = vunpack.c.l.b16 %v1622
    %v1631 = vunpack.c.l.b16 %v1623
    %v1632 = vunpack.c.l.b16 %v1624
    %v1633 = vpack.c.b16 %v1630, %v1629
    %v1634 = vpack.c.b16 %v1632, %v1631
    %vm1637 = vcmask 261120
    %v1639 = vsel %vm1637, %v1620, 0
    %1641 = vmatprep.subr.bf16.mxu0 0
    %1642 = vmatpush1.bf16.msra.mxu0 %v1633
    %1643 = vmatprep.subr.bf16.mxu0 0
    %1644 = vmatpush1.bf16.msra.mxu0 %v1634
    %1645 = vmatprep.subr.bf16.mxu0 0
    %1646 = vmatpush1.bf16.msra.mxu0 0
    %1647 = vmatprep.subr.bf16.mxu0 0
    %1648 = vmatpush1.bf16.msra.mxu0 0
    %1649 = vmatprep.subr.bf16.mxu0 0
    %1650 = vmatpush1.bf16.msra.mxu0 0
    %1651 = vmatprep.subr.bf16.mxu0 0
    %1652 = vmatpush1.bf16.msra.mxu0 0
    %1653 = vmatprep.subr.bf16.mxu0 0
    %1654 = vmatpush1.bf16.msra.mxu0 0
    %1655 = vmatprep.subr.bf16.mxu0 0
    %1656 = vmatpush1.bf16.msra.mxu0 0
    %1657 = vmatprep.subr.bf16.mxu0 0
    %1658 = vmatpush1.bf16.msra.mxu0 0
    %1659 = vmatprep.subr.bf16.mxu0 0
    %1660 = vmatpush1.bf16.msra.mxu0 0
    %1661 = vmatprep.subr.bf16.mxu0 0
    %1662 = vmatpush1.bf16.msra.mxu0 0
    %1663 = vmatprep.subr.bf16.mxu0 0
    %1664 = vmatpush1.bf16.msra.mxu0 0
    %1665 = vmatprep.subr.bf16.mxu0 0
    %1666 = vmatpush1.bf16.msra.mxu0 0
    %1667 = vmatprep.subr.bf16.mxu0 0
    %1668 = vmatpush1.bf16.msra.mxu0 0
    %1669 = vmatprep.subr.bf16.mxu0 0
    %1670 = vmatpush1.bf16.msra.mxu0 0
    %1671 = vmatprep.subr.bf16.mxu0 0
    %1672 = vmatpush1.bf16.msra.mxu0 0
    %1673 = vmatprep.mubr.bf16.mxu0 0
    %1674 = vmatmul.mubr.bf16.gmra.mrb[0].mxu0 %v1639
    %v1675 = vpop.f32.mrb[0].mxu0
    %v1676 = vadd.f32 %v142, %v1675
    %v1677 = vpop.f32.mrb[0].mxu0
    %v1678 = vpop.f32.mrb[0].mxu0
    %v1679 = vpop.f32.mrb[0].mxu0
    %1680 = vdwg.mxu0
    %vm1681 = vcmask 25600
    %v1682 = vsel %vm1681, %v1676, -inf
    %1683 = vmax.xlane.f32.xlu0 %v1682
    %v1684 = vpop.xlane.xlu0 %1683
    %v1685 = vsub.f32 %v1676, %v1684
    %v1686 = vmul.f32 %v1685, 1.442695
    %v1687 = vpow.pop %v1686
    %v1688 = vsel %vm1681, %v1687, 0.0
    %1689 = vadd.xlane.f32.xlu0 %v1688
    %v1690 = vpop.xlane.xlu0 %1689
    %v1691 = vlog2.pop %v1690
    %v1692 = vmul.f32 %v1691, 0.6931472
    %v1693 = vsub.f32 %v1685, %v1692
    %1694 = vst.msk [vmem:[#allocation10] sm:$0x3] %vm1681, %v1693
    // Predicated region
    $region34: #{tpu_custom_call.1} parent=1 // pred_check
      _
    $region35: #{tpu_custom_call.1} parent=1 // pred_check_branch
      %1696 = sbr.rel (0) target = $region37
    $region36: #{tpu_custom_call.1} parent=1 // pred_region
      %s1698 = ssub.s32 32, 32
      %1699 = vsyncadd [#allocation4], %s1698
      %s1701 = sshll.u32 [#allocation10], 4
      %s1702 = int_to_ptr.vmem [resolvable:$true] %s1701
      %1704 = dma.vmem_to_hbm [thread:$0]  %s1702, 32, %s4, [#allocation4]
    $region37: #{tpu_custom_call.1} parent=1 // pred_fallthru
      _
    // Predicated region
    $region38: #{tpu_custom_call.1} parent=1 // pred_check
      _
    $region39: #{tpu_custom_call.1} parent=1 // pred_check_branch
      %1706 = sbr.rel (0) target = $region41
    $region40: #{tpu_custom_call.1} parent=1 // pred_region
      %1707 = dma.done [#allocation4], 32
    $region41: #{tpu_custom_call.1} parent=1 // pred_fallthru
      _
    %1708 = vsyncpa [#allocation3], 1
    %1709 = vsyncpa [#allocation6], 1
    %1710 = vsyncpa [#allocation9], 1
    %1711 = vsyncpa [#allocation4], 1

</llo_original>
